<compile_context>
chip_gen: v7x
topology: tpu7x:2x2x1
jax: 0.10.0
libtpu: 0.0.40
codegen_flags: <defaults>
</compile_context>

<pallas_src>
import functools

import numpy as np
import jax
import jax.numpy as jnp
from jax.experimental import pallas as pl
from jax.experimental.pallas import tpu as pltpu


# --------------------------------------------------------------------------
# Pallas kernel: entire forward pass for one batch tile
# --------------------------------------------------------------------------
def dual_channel_kernel(x_ref, w1_ref, b1_ref, w2_ref, b2_ref,
                        wt1_ref, bt1_ref, wn1_ref, bn1_ref,
                        wt2_ref, wn2_ref, bout_ref, out_ref,
                        *, use_bf16=False):
    def mm(a, w_ref):
        w = w_ref[...]
        if use_bf16:                       # optional bf16 MXU inputs (v5e)
            a = a.astype(jnp.bfloat16)
            w = w.astype(jnp.bfloat16)
        return jnp.dot(a, w, preferred_element_type=jnp.float32)

    x = x_ref[...]                                                # (TB, 2L)
    # fused conv1 (+bias, relu): block-Toeplitz matmul, lane-dense output
    h1 = jnp.maximum(mm(x, w1_ref) + b1_ref[...], 0.0)           # (TB, L*2F)
    # fused conv2 (+bias, relu); columns pre-permuted by pooling phase
    h2 = jnp.maximum(mm(h1, w2_ref) + b2_ref[...], 0.0)          # (TB, L*4F)
    half = h2.shape[1] // 2
    # MaxPool1d(2): max of even-position half vs odd-position half (128-aligned)
    pooled = jnp.maximum(h2[:, :half], h2[:, half:])             # (TB, L*2F)
    # fc_turbidity_1 (+relu); row permutation baked into the weight
    th = jnp.maximum(mm(pooled, wt1_ref) + bt1_ref[...], 0.0)    # (TB, 64)
    # fc_nitrate_1 with fc_turbidity_2 folded in (+relu)
    nh = jnp.maximum(mm(th, wn1_ref) + bn1_ref[...], 0.0)        # (TB, 32)
    # both scalar heads emitted into one lane-dense slab:
    #   lane 0 = nitrate_pred, lane 1 = turbidity_pred
    out_ref[...] = mm(th, wt2_ref) + mm(nh, wn2_ref) + bout_ref[...]


# --------------------------------------------------------------------------
# One-time parameter packing (numpy, hoisted out of the inference path)
# --------------------------------------------------------------------------
def pack_params(params, L):
    (w1w, b1w, w2w, b2w, w1a, b1a, w2a, b2a,
     wt1, bt1, wt2, bt2, wn1, bn1, wn2, bn2) = [
        np.asarray(p, np.float32) for p in params]
    F, _, K = w1w.shape
    F2 = 2 * F
    pad = K // 2
    Lh = L // 2
    C1 = 2 * F            # fused conv1 channels per position (both branches)
    C2 = 2 * F2           # fused conv2 channels per position
    flatten_size = 2 * F2 * Lh
    assert wt1.shape == (64, flatten_size)

    # conv1 as (2L, L*C1): input lane = branch*L + l_in,
    # output lane = l_out*C1 + branch*F + f
    W1 = np.zeros((2 * L, L * C1), np.float32)
    b1 = np.zeros((1, L * C1), np.float32)
    for br, (w, b) in enumerate(((w1w, b1w), (w1a, b1a))):
        for lo in range(L):
            for t in range(K):
                li = lo + t - pad
                if 0 <= li < L:
                    W1[br * L + li, lo * C1 + br * F: lo * C1 + br * F + F] = w[:, 0, t]
            b1[0, lo * C1 + br * F: lo * C1 + br * F + F] = b

    # conv2 as (L*C1, L*C2); output columns permuted so even positions occupy
    # the first Lh*C2 lanes and odd positions the last -> maxpool = max of halves
    W2 = np.zeros((L * C1, L * C2), np.float32)
    b2 = np.zeros((1, L * C2), np.float32)
    for br, (w, b) in enumerate(((w2w, b2w), (w2a, b2a))):
        for lo in range(L):
            col = (lo % 2) * (Lh * C2) + (lo // 2) * C2 + br * F2
            for t in range(K):
                li = lo + t - pad
                if 0 <= li < L:
                    for f in range(F):
                        W2[li * C1 + br * F + f, col: col + F2] = w[:, f, t]
            b2[0, col: col + F2] = b

    # fc_turbidity_1: rows permuted from PyTorch flatten order (branch, g, p)
    # to pooled lane order (p, branch, g)
    Wt1 = np.zeros((Lh * C2, 64), np.float32)
    for br in range(2):
        for g in range(F2):
            for p in range(Lh):
                Wt1[p * C2 + br * F2 + g, :] = wt1[:, br * F2 * Lh + g * Lh + p]
    bt1_p = bt1.reshape(1, 64)

    # fold fc_turbidity_2 into fc_nitrate_1 (removes the (B, 65) concat):
    #   nh = relu(th @ (Wn1a + wt2^T ⊗ wn1_col) + (bn1 + bt2*wn1_col))
    Wn1 = wn1[:, :64].T + np.outer(wt2[0, :], wn1[:, 64])         # (64, 32)
    bn1_f = (bn1 + bt2[0] * wn1[:, 64]).reshape(1, 32)

    # both scalar heads padded into one lane-dense 128-wide output projection
    OUT_W = 128
    Wt2p = np.zeros((64, OUT_W), np.float32)
    Wt2p[:, 1] = wt2[0, :]                                        # turbidity -> lane 1
    Wn2p = np.zeros((32, OUT_W), np.float32)
    Wn2p[:, 0] = wn2[0, :]                                        # nitrate  -> lane 0
    bout = np.zeros((1, OUT_W), np.float32)
    bout[0, 0] = bn2[0]
    bout[0, 1] = bt2[0]

    return tuple(jnp.asarray(a) for a in
                 (W1, b1, W2, b2, Wt1, bt1_p, Wn1, bn1_f, Wt2p, Wn2p, bout))


# --------------------------------------------------------------------------
# JAX wrapper: batch-tiled pallas_call on pre-packed parameters
# --------------------------------------------------------------------------
def dual_channel_forward(x, packed, *, block_b=8, use_bf16=False):
    B, C, L = x.shape
    assert C == 2 and L % 2 == 0
    (W1, b1, W2, b2, Wt1, bt1, Wn1, bn1, Wt2p, Wn2p, bout) = packed
    OUT_W = Wt2p.shape[1]

    # single lane-packed input (branch-major: lane = branch*L + l); contiguous reshape
    x_pack = x.reshape(B, 2 * L)
    B_pad = ((B + block_b - 1) // block_b) * block_b
    if B_pad != B:
        x_pack = jnp.pad(x_pack, ((0, B_pad - B), (0, 0)))

    def full_spec(a):
        return pl.BlockSpec(a.shape, lambda i: (0, 0))

    grid_spec = pltpu.PrefetchScalarGridSpec(
        num_scalar_prefetch=0,
        grid=(B_pad // block_b,),
        in_specs=[pl.BlockSpec((block_b, 2 * L), lambda i: (i, 0))]
                 + [full_spec(a) for a in packed],
        out_specs=pl.BlockSpec((block_b, OUT_W), lambda i: (i, 0)),
    )

    out = pl.pallas_call(
        functools.partial(dual_channel_kernel, use_bf16=use_bf16),
        out_shape=jax.ShapeDtypeStruct((B_pad, OUT_W), jnp.float32),
        grid_spec=grid_spec,
        compiler_params=pltpu.CompilerParams(
            dimension_semantics=("parallel",)),   # shards over v7x's 2 TCs
    )(x_pack, *packed)

    nitrate = out[:B, 0:1]
    turbidity = out[:B, 1:2]
    return nitrate, turbidity


# --------------------------------------------------------------------------
# Deterministic parameter init (PyTorch shapes; synthetic values)
# --------------------------------------------------------------------------
def init_params(key, num_filters, kernel_size, flatten_size):
    F = num_filters

    def u(k, shape, fan_in):
        bound = 1.0 / np.sqrt(fan_in)
        return jax.random.uniform(k, shape, jnp.float32, -bound, bound)

    ks = jax.random.split(key, 16)
    return (
        u(ks[0], (F, 1, kernel_size), 1 * kernel_size),         # conv1_wavelength.w
        u(ks[1], (F,), 1 * kernel_size),                        # conv1_wavelength.b
        u(ks[2], (2 * F, F, kernel_size), F * kernel_size),     # conv2_wavelength.w
        u(ks[3], (2 * F,), F * kernel_size),                    # conv2_wavelength.b
        u(ks[4], (F, 1, kernel_size), 1 * kernel_size),         # conv1_absorbance.w
        u(ks[5], (F,), 1 * kernel_size),                        # conv1_absorbance.b
        u(ks[6], (2 * F, F, kernel_size), F * kernel_size),     # conv2_absorbance.w
        u(ks[7], (2 * F,), F * kernel_size),                    # conv2_absorbance.b
        u(ks[8], (64, flatten_size), flatten_size),             # fc_turbidity_1.w
        u(ks[9], (64,), flatten_size),                          # fc_turbidity_1.b
        u(ks[10], (1, 64), 64),                                 # fc_turbidity_2.w
        u(ks[11], (1,), 64),                                    # fc_turbidity_2.b
        u(ks[12], (32, 65), 65),                                # fc_nitrate_1.w
        u(ks[13], (32,), 65),                                   # fc_nitrate_1.b
        u(ks[14], (1, 32), 32),                                 # fc_nitrate_2.w
        u(ks[15], (1,), 32),                                    # fc_nitrate_2.b
    )


# --------------------------------------------------------------------------
# Pure-JAX reference (mirrors the PyTorch forward exactly) for validation
# --------------------------------------------------------------------------
def ref_forward(x, params):
    (w1w, b1w, w2w, b2w, w1a, b1a, w2a, b2a,
     wt1, bt1, wt2, bt2, wn1, bn1, wn2, bn2) = params

    def conv1d(inp, w, b):  # inp (B,Cin,L), w (Cout,Cin,K) — same-length conv
        K = w.shape[2]
        pad = K // 2
        L = inp.shape[2]
        xpad = jnp.pad(inp, ((0, 0), (0, 0), (pad, pad)))
        out = jnp.zeros((inp.shape[0], w.shape[0], L), jnp.float32)
        for t in range(K):
            out = out + jnp.einsum('bcl,oc->bol', xpad[:, :, t:t + L], w[:, :, t])
        return out + b[None, :, None]

    def branch(inp, w1, b1, w2, b2):
        h = jax.nn.relu(conv1d(inp, w1, b1))
        h = jax.nn.relu(conv1d(h, w2, b2))
        B, Ch, L = h.shape
        h = jnp.max(h.reshape(B, Ch, L // 2, 2), axis=3)   # MaxPool1d(2)
        return h.reshape(B, -1)                            # channel-major flatten

    ow = branch(x[:, 0:1, :], w1w, b1w, w2w, b2w)
    oa = branch(x[:, 1:2, :], w1a, b1a, w2a, b2a)
    comb = jnp.concatenate([ow, oa], axis=1)
    th = jax.nn.relu(comb @ wt1.T + bt1)
    tp = th @ wt2.T + bt2
    ni = jnp.concatenate([th, tp], axis=1)
    nh = jax.nn.relu(ni @ wn1.T + bn1)
    npred = nh @ wn2.T + bn2
    return npred, tp


if __name__ == "__main__":
    B, L = 2, 16
    num_filters, kernel_size = 4, 3
    Lh, F2 = L // 2, 2 * num_filters
    flatten_size = 2 * F2 * Lh          # 128

    key = jax.random.PRNGKey(0)
    pkey, xkey = jax.random.split(key)
    params = init_params(pkey, num_filters, kernel_size, flatten_size)
    x = jax.random.normal(xkey, (B, 2, L), jnp.float32)

    packed = pack_params(params, L)     # one-time layout packing (hoisted)
    nit, turb = dual_channel_forward(x, packed)
    jax.block_until_ready((nit, turb))

    nit_ref, turb_ref = ref_forward(x, params)
    assert nit.shape == (B, 1) and turb.shape == (B, 1)
    assert np.allclose(np.asarray(turb), np.asarray(turb_ref), atol=1e-4, rtol=1e-4)
    assert np.allclose(np.asarray(nit), np.asarray(nit_ref), atol=1e-4, rtol=1e-4)
    print("KERNEL_OK")
</pallas_src>

<mosaic_0001>
module attributes {stable_mosaic.version = 11 : i64} {
  func.func @dual_channel_kernel(%arg0: i32, %arg1: memref<8x32xf32, #tpu.memory_space<vmem>>, %arg2: memref<32x128xf32, #tpu.memory_space<vmem>>, %arg3: memref<1x128xf32, #tpu.memory_space<vmem>>, %arg4: memref<128x256xf32, #tpu.memory_space<vmem>>, %arg5: memref<1x256xf32, #tpu.memory_space<vmem>>, %arg6: memref<128x64xf32, #tpu.memory_space<vmem>>, %arg7: memref<1x64xf32, #tpu.memory_space<vmem>>, %arg8: memref<64x32xf32, #tpu.memory_space<vmem>>, %arg9: memref<1x32xf32, #tpu.memory_space<vmem>>, %arg10: memref<64x128xf32, #tpu.memory_space<vmem>>, %arg11: memref<32x128xf32, #tpu.memory_space<vmem>>, %arg12: memref<1x128xf32, #tpu.memory_space<vmem>>, %arg13: memref<8x128xf32, #tpu.memory_space<vmem>>) attributes {dimension_semantics = [#tpu.dimension_semantics<parallel>], iteration_bounds = array<i64: 1>, scalar_prefetch = 0 : i64, scratch_operands = 0 : i64, tpu.core_type = #tpu.core_type<tc>, window_params = [{transform_indices = @transform_0, window_bounds = array<i64: 8, 32>}, {pipeline_mode = #tpu.pipeline_mode<synchronous>, transform_indices = @transform_1, window_bounds = array<i64: 32, 128>}, {pipeline_mode = #tpu.pipeline_mode<synchronous>, transform_indices = @transform_2, window_bounds = array<i64: 1, 128>}, {pipeline_mode = #tpu.pipeline_mode<synchronous>, transform_indices = @transform_3, window_bounds = array<i64: 128, 256>}, {pipeline_mode = #tpu.pipeline_mode<synchronous>, transform_indices = @transform_4, window_bounds = array<i64: 1, 256>}, {pipeline_mode = #tpu.pipeline_mode<synchronous>, transform_indices = @transform_5, window_bounds = array<i64: 128, 64>}, {pipeline_mode = #tpu.pipeline_mode<synchronous>, transform_indices = @transform_6, window_bounds = array<i64: 1, 64>}, {pipeline_mode = #tpu.pipeline_mode<synchronous>, transform_indices = @transform_7, window_bounds = array<i64: 64, 32>}, {pipeline_mode = #tpu.pipeline_mode<synchronous>, transform_indices = @transform_8, window_bounds = array<i64: 1, 32>}, {pipeline_mode = #tpu.pipeline_mode<synchronous>, transform_indices = @transform_9, window_bounds = array<i64: 64, 128>}, {pipeline_mode = #tpu.pipeline_mode<synchronous>, transform_indices = @transform_10, window_bounds = array<i64: 32, 128>}, {pipeline_mode = #tpu.pipeline_mode<synchronous>, transform_indices = @transform_11, window_bounds = array<i64: 1, 128>}, {transform_indices = @transform_12, window_bounds = array<i64: 8, 128>}]} {
    %c0 = arith.constant 0 : index
    %c0_0 = arith.constant 0 : index
    %0 = vector.load %arg1[%c0, %c0_0] : memref<8x32xf32, #tpu.memory_space<vmem>>, vector<8x32xf32>
    %c0_1 = arith.constant 0 : index
    %c0_2 = arith.constant 0 : index
    %1 = vector.load %arg2[%c0_1, %c0_2] : memref<32x128xf32, #tpu.memory_space<vmem>>, vector<32x128xf32>
    %cst = arith.constant dense<0.000000e+00> : vector<8x128xf32>
    %2 = tpu.matmul %0, %1, %cst {dimension_numbers = #tpu.dot_dimension_numbers<[1], [0], [0], [1], [0, 0, 1, 1], [], []>} : vector<8x32xf32>, vector<32x128xf32>, vector<8x128xf32> -> vector<8x128xf32>
    %c0_3 = arith.constant 0 : index
    %c0_4 = arith.constant 0 : index
    %3 = vector.load %arg3[%c0_3, %c0_4] : memref<1x128xf32, #tpu.memory_space<vmem>>, vector<1x128xf32>
    %4 = vector.broadcast %3 : vector<1x128xf32> to vector<8x128xf32>
    %5 = arith.addf %2, %4 : vector<8x128xf32>
    %cst_5 = arith.constant 0.000000e+00 : f32
    %6 = vector.broadcast %cst_5 : f32 to vector<8x128xf32>
    %7 = arith.maximumf %5, %6 : vector<8x128xf32>
    %c0_6 = arith.constant 0 : index
    %c0_7 = arith.constant 0 : index
    %8 = vector.load %arg4[%c0_6, %c0_7] : memref<128x256xf32, #tpu.memory_space<vmem>>, vector<128x256xf32>
    %cst_8 = arith.constant dense<0.000000e+00> : vector<8x256xf32>
    %9 = tpu.matmul %7, %8, %cst_8 {dimension_numbers = #tpu.dot_dimension_numbers<[1], [0], [0], [1], [0, 0, 1, 1], [], []>} : vector<8x128xf32>, vector<128x256xf32>, vector<8x256xf32> -> vector<8x256xf32>
    %c0_9 = arith.constant 0 : index
    %c0_10 = arith.constant 0 : index
    %10 = vector.load %arg5[%c0_9, %c0_10] : memref<1x256xf32, #tpu.memory_space<vmem>>, vector<1x256xf32>
    %11 = vector.broadcast %10 : vector<1x256xf32> to vector<8x256xf32>
    %12 = arith.addf %9, %11 : vector<8x256xf32>
    %cst_11 = arith.constant 0.000000e+00 : f32
    %13 = vector.broadcast %cst_11 : f32 to vector<8x256xf32>
    %14 = arith.maximumf %12, %13 : vector<8x256xf32>
    %15 = vector.extract_strided_slice %14 {offsets = [0, 0], sizes = [8, 128], strides = [1, 1]} : vector<8x256xf32> to vector<8x128xf32>
    %16 = vector.extract_strided_slice %14 {offsets = [0, 128], sizes = [8, 128], strides = [1, 1]} : vector<8x256xf32> to vector<8x128xf32>
    %17 = arith.maximumf %15, %16 : vector<8x128xf32>
    %c0_12 = arith.constant 0 : index
    %c0_13 = arith.constant 0 : index
    %18 = vector.load %arg6[%c0_12, %c0_13] : memref<128x64xf32, #tpu.memory_space<vmem>>, vector<128x64xf32>
    %cst_14 = arith.constant dense<0.000000e+00> : vector<8x64xf32>
    %19 = tpu.matmul %17, %18, %cst_14 {dimension_numbers = #tpu.dot_dimension_numbers<[1], [0], [0], [1], [0, 0, 1, 1], [], []>} : vector<8x128xf32>, vector<128x64xf32>, vector<8x64xf32> -> vector<8x64xf32>
    %c0_15 = arith.constant 0 : index
    %c0_16 = arith.constant 0 : index
    %20 = vector.load %arg7[%c0_15, %c0_16] : memref<1x64xf32, #tpu.memory_space<vmem>>, vector<1x64xf32>
    %21 = vector.broadcast %20 : vector<1x64xf32> to vector<8x64xf32>
    %22 = arith.addf %19, %21 : vector<8x64xf32>
    %cst_17 = arith.constant 0.000000e+00 : f32
    %23 = vector.broadcast %cst_17 : f32 to vector<8x64xf32>
    %24 = arith.maximumf %22, %23 : vector<8x64xf32>
    %c0_18 = arith.constant 0 : index
    %c0_19 = arith.constant 0 : index
    %25 = vector.load %arg8[%c0_18, %c0_19] : memref<64x32xf32, #tpu.memory_space<vmem>>, vector<64x32xf32>
    %cst_20 = arith.constant dense<0.000000e+00> : vector<8x32xf32>
    %26 = tpu.matmul %24, %25, %cst_20 {dimension_numbers = #tpu.dot_dimension_numbers<[1], [0], [0], [1], [0, 0, 1, 1], [], []>} : vector<8x64xf32>, vector<64x32xf32>, vector<8x32xf32> -> vector<8x32xf32>
    %c0_21 = arith.constant 0 : index
    %c0_22 = arith.constant 0 : index
    %27 = vector.load %arg9[%c0_21, %c0_22] : memref<1x32xf32, #tpu.memory_space<vmem>>, vector<1x32xf32>
    %28 = vector.broadcast %27 : vector<1x32xf32> to vector<8x32xf32>
    %29 = arith.addf %26, %28 : vector<8x32xf32>
    %cst_23 = arith.constant 0.000000e+00 : f32
    %30 = vector.broadcast %cst_23 : f32 to vector<8x32xf32>
    %31 = arith.maximumf %29, %30 : vector<8x32xf32>
    %c0_24 = arith.constant 0 : index
    %c0_25 = arith.constant 0 : index
    %32 = vector.load %arg10[%c0_24, %c0_25] : memref<64x128xf32, #tpu.memory_space<vmem>>, vector<64x128xf32>
    %cst_26 = arith.constant dense<0.000000e+00> : vector<8x128xf32>
    %33 = tpu.matmul %24, %32, %cst_26 {dimension_numbers = #tpu.dot_dimension_numbers<[1], [0], [0], [1], [0, 0, 1, 1], [], []>} : vector<8x64xf32>, vector<64x128xf32>, vector<8x128xf32> -> vector<8x128xf32>
    %c0_27 = arith.constant 0 : index
    %c0_28 = arith.constant 0 : index
    %34 = vector.load %arg11[%c0_27, %c0_28] : memref<32x128xf32, #tpu.memory_space<vmem>>, vector<32x128xf32>
    %cst_29 = arith.constant dense<0.000000e+00> : vector<8x128xf32>
    %35 = tpu.matmul %31, %34, %cst_29 {dimension_numbers = #tpu.dot_dimension_numbers<[1], [0], [0], [1], [0, 0, 1, 1], [], []>} : vector<8x32xf32>, vector<32x128xf32>, vector<8x128xf32> -> vector<8x128xf32>
    %36 = arith.addf %33, %35 : vector<8x128xf32>
    %c0_30 = arith.constant 0 : index
    %c0_31 = arith.constant 0 : index
    %37 = vector.load %arg12[%c0_30, %c0_31] : memref<1x128xf32, #tpu.memory_space<vmem>>, vector<1x128xf32>
    %38 = vector.broadcast %37 : vector<1x128xf32> to vector<8x128xf32>
    %39 = arith.addf %36, %38 : vector<8x128xf32>
    %c0_32 = arith.constant 0 : index
    %c0_33 = arith.constant 0 : index
    %40 = vector.load %arg13[%c0_32, %c0_33] : memref<8x128xf32, #tpu.memory_space<vmem>>, vector<8x128xf32>
    tpu.vector_store %arg13[%c0_32, %c0_33], %39 {strides = array<i32>} : memref<8x128xf32, #tpu.memory_space<vmem>>, vector<8x128xf32>,
    return
  }
  func.func @transform_0(%arg0: i32) -> (i32, i32) {
    %c0_i32 = arith.constant 0 : i32
    %c0_i32_0 = arith.constant 0 : i32
    return %arg0, %c0_i32 : i32, i32
  }
  func.func @transform_1(%arg0: i32) -> (i32, i32) {
    %c0_i32 = arith.constant 0 : i32
    %c0_i32_0 = arith.constant 0 : i32
    %c0_i32_1 = arith.constant 0 : i32
    return %c0_i32, %c0_i32_0 : i32, i32
  }
  func.func @transform_2(%arg0: i32) -> (i32, i32) {
    %c0_i32 = arith.constant 0 : i32
    %c0_i32_0 = arith.constant 0 : i32
    %c0_i32_1 = arith.constant 0 : i32
    return %c0_i32, %c0_i32_0 : i32, i32
  }
  func.func @transform_3(%arg0: i32) -> (i32, i32) {
    %c0_i32 = arith.constant 0 : i32
    %c0_i32_0 = arith.constant 0 : i32
    %c0_i32_1 = arith.constant 0 : i32
    return %c0_i32, %c0_i32_0 : i32, i32
  }
  func.func @transform_4(%arg0: i32) -> (i32, i32) {
    %c0_i32 = arith.constant 0 : i32
    %c0_i32_0 = arith.constant 0 : i32
    %c0_i32_1 = arith.constant 0 : i32
    return %c0_i32, %c0_i32_0 : i32, i32
  }
  func.func @transform_5(%arg0: i32) -> (i32, i32) {
    %c0_i32 = arith.constant 0 : i32
    %c0_i32_0 = arith.constant 0 : i32
    %c0_i32_1 = arith.constant 0 : i32
    return %c0_i32, %c0_i32_0 : i32, i32
  }
  func.func @transform_6(%arg0: i32) -> (i32, i32) {
    %c0_i32 = arith.constant 0 : i32
    %c0_i32_0 = arith.constant 0 : i32
    %c0_i32_1 = arith.constant 0 : i32
    return %c0_i32, %c0_i32_0 : i32, i32
  }
  func.func @transform_7(%arg0: i32) -> (i32, i32) {
    %c0_i32 = arith.constant 0 : i32
    %c0_i32_0 = arith.constant 0 : i32
    %c0_i32_1 = arith.constant 0 : i32
    return %c0_i32, %c0_i32_0 : i32, i32
  }
  func.func @transform_8(%arg0: i32) -> (i32, i32) {
    %c0_i32 = arith.constant 0 : i32
    %c0_i32_0 = arith.constant 0 : i32
    %c0_i32_1 = arith.constant 0 : i32
    return %c0_i32, %c0_i32_0 : i32, i32
  }
  func.func @transform_9(%arg0: i32) -> (i32, i32) {
    %c0_i32 = arith.constant 0 : i32
    %c0_i32_0 = arith.constant 0 : i32
    %c0_i32_1 = arith.constant 0 : i32
    return %c0_i32, %c0_i32_0 : i32, i32
  }
  func.func @transform_10(%arg0: i32) -> (i32, i32) {
    %c0_i32 = arith.constant 0 : i32
    %c0_i32_0 = arith.constant 0 : i32
    %c0_i32_1 = arith.constant 0 : i32
    return %c0_i32, %c0_i32_0 : i32, i32
  }
  func.func @transform_11(%arg0: i32) -> (i32, i32) {
    %c0_i32 = arith.constant 0 : i32
    %c0_i32_0 = arith.constant 0 : i32
    %c0_i32_1 = arith.constant 0 : i32
    return %c0_i32, %c0_i32_0 : i32, i32
  }
  func.func @transform_12(%arg0: i32) -> (i32, i32) {
    %c0_i32 = arith.constant 0 : i32
    %c0_i32_0 = arith.constant 0 : i32
    return %arg0, %c0_i32 : i32, i32
  }
}

</mosaic_0001>

<llo_original>
// kernel: tpu_custom_call.1
$region0: #{tpu_custom_call.1}
  #allocation0 [shape = 'u32[]', space=smem, size = 0x4, offset = 0x4, fixed_abs, tag = 'smem constant byte address 0x4 - core index']
  #allocation1 [shape = 'u32[144,128]{1,0:T(1,128)}', space=vmem, size = 0x12000, scoped, tag = 'internal scratch']
  %s0 = inlined_call_operand.hbm [shape: f32[8,32], index: 0, kind: input, shape index: {}]
  %s1 = inlined_call_operand.hbm [shape: f32[32,128], index: 1, kind: input, shape index: {}]
  %s2 = inlined_call_operand.hbm [shape: f32[1,128], index: 2, kind: input, shape index: {}]
  %s3 = inlined_call_operand.vmem [shape: f32[128,256], index: 3, kind: input, shape index: {}]
  %s4 = inlined_call_operand.vmem [shape: f32[1,256], index: 4, kind: input, shape index: {}]
  %s5 = inlined_call_operand.vmem [shape: f32[128,64], index: 5, kind: input, shape index: {}]
  %s6 = inlined_call_operand.hbm [shape: f32[1,64], index: 6, kind: input, shape index: {}]
  %s7 = inlined_call_operand.vmem [shape: f32[64,32], index: 7, kind: input, shape index: {}]
  %s8 = inlined_call_operand.hbm [shape: f32[1,32], index: 8, kind: input, shape index: {}]
  %s9 = inlined_call_operand.vmem [shape: f32[64,128], index: 9, kind: input, shape index: {}]
  %s10 = inlined_call_operand.hbm [shape: f32[32,128], index: 10, kind: input, shape index: {}]
  %s11 = inlined_call_operand.vmem [shape: f32[1,128], index: 11, kind: input, shape index: {}]
  %s12 = inlined_call_operand.hbm [shape: f32[8,128], index: 12, kind: output, shape index: {}]
  %s13 = sld [smem:[#allocation0]]
  $region82: #{tpu_custom_call.1} parent=0
    _
  %s15 = ssub.s32 1, %s13
  %s16 = scalar_select 0, %s15, %s13
  $region1: #{tpu_custom_call.1} parent=0
    #allocation2 [shape = 'u8[4096]{0}', space=vmem, size = 0x1000, scoped, tag = 'input window, operand 0, single buffered']
    #allocation3 [shape = 's32[1]{0}', space=sflag, size = 0x4, scoped, tag = 'scoped memory for tpu_custom_call.1']
    #allocation4 [shape = 's32[1]{0}', space=sflag, size = 0x4, scoped, tag = 'scoped memory for tpu_custom_call.1']
    #allocation5 [shape = 'u8[16384]{0}', space=vmem, size = 0x4000, scoped, tag = 'input window, operand 1, single buffered']
    #allocation6 [shape = 's32[1]{0}', space=sflag, size = 0x4, scoped, tag = 'scoped memory for tpu_custom_call.1']
    #allocation7 [shape = 'u8[512]{0}', space=vmem, size = 0x400, scoped, tag = 'input window, operand 2, single buffered']
    #allocation8 [shape = 'u8[512]{0}', space=vmem, size = 0x400, scoped, tag = 'input window, operand 6, single buffered']
    #allocation9 [shape = 's32[1]{0}', space=sflag, size = 0x4, scoped, tag = 'scoped memory for tpu_custom_call.1']
    #allocation10 [shape = 'u8[512]{0}', space=vmem, size = 0x400, scoped, tag = 'input window, operand 8, single buffered']
    #allocation11 [shape = 'u8[16384]{0}', space=vmem, size = 0x4000, scoped, tag = 'input window, operand 10, single buffered']
    #allocation12 [shape = 's32[1]{0}', space=sflag, size = 0x4, scoped, tag = 'scoped memory for tpu_custom_call.1']
    #allocation13 [shape = 'u8[4096]{0}', space=vmem, size = 0x1000, scoped, tag = 'output window, operand 0, single buffered']
    %17 = vsyncpa [#allocation3], 0
    %18 = vsyncpa [#allocation6], 0
    %19 = vsyncpa [#allocation9], 0
    %20 = vsyncpa [#allocation12], 0
    %21 = vsyncpa [#allocation4], 0
    // Predicated region
    $region2: #{tpu_custom_call.1} parent=1 // pred_check
      _
    $region3: #{tpu_custom_call.1} parent=1 // pred_check_branch
      %23 = sbr.rel (0) target = $region5
    $region4: #{tpu_custom_call.1} parent=1 // pred_region
      %s25 = ssub.s32 128, 128
      %26 = vsyncadd [#allocation3], %s25
      %s28 = sshll.u32 [#allocation2], 4
      %s29 = int_to_ptr.vmem [resolvable:$true] %s28
      %31 = dma.hbm_to_vmem [thread:$0]  %s0, 128, %s29, [#allocation3]
    $region5: #{tpu_custom_call.1} parent=1 // pred_fallthru
      _
    // Predicated region
    $region6: #{tpu_custom_call.1} parent=1 // pred_check
      _
    $region7: #{tpu_custom_call.1} parent=1 // pred_check_branch
      %33 = sbr.rel (0) target = $region9
    $region8: #{tpu_custom_call.1} parent=1 // pred_region
      %s35 = ssub.s32 512, 512
      %36 = vsyncadd [#allocation6], %s35
      %s37 = sshll.u32 [#allocation5], 4
      %s38 = int_to_ptr.vmem [resolvable:$true] %s37
      %43 = dma.hbm_to_vmem [thread:$0]  %s1, 512, %s38, [#allocation6], 128, 128, 8
    $region9: #{tpu_custom_call.1} parent=1 // pred_fallthru
      _
    // Predicated region
    $region10: #{tpu_custom_call.1} parent=1 // pred_check
      _
    $region11: #{tpu_custom_call.1} parent=1 // pred_check_branch
      %45 = sbr.rel (0) target = $region13
    $region12: #{tpu_custom_call.1} parent=1 // pred_region
      %s47 = ssub.s32 16, 16
      %48 = vsyncadd [#allocation6], %s47
      %s50 = sshll.u32 [#allocation7], 4
      %s51 = int_to_ptr.vmem [resolvable:$true] %s50
      %53 = dma.hbm_to_vmem [thread:$0]  %s2, 16, %s51, [#allocation6]
    $region13: #{tpu_custom_call.1} parent=1 // pred_fallthru
      _
    // Predicated region
    $region14: #{tpu_custom_call.1} parent=1 // pred_check
      _
    $region15: #{tpu_custom_call.1} parent=1 // pred_check_branch
      %55 = sbr.rel (0) target = $region17
    $region16: #{tpu_custom_call.1} parent=1 // pred_region
      _
    $region17: #{tpu_custom_call.1} parent=1 // pred_fallthru
      _
    // Predicated region
    $region18: #{tpu_custom_call.1} parent=1 // pred_check
      _
    $region19: #{tpu_custom_call.1} parent=1 // pred_check_branch
      %57 = sbr.rel (0) target = $region21
    $region20: #{tpu_custom_call.1} parent=1 // pred_region
      _
    $region21: #{tpu_custom_call.1} parent=1 // pred_fallthru
      _
    // Predicated region
    $region22: #{tpu_custom_call.1} parent=1 // pred_check
      _
    $region23: #{tpu_custom_call.1} parent=1 // pred_check_branch
      %59 = sbr.rel (0) target = $region25
    $region24: #{tpu_custom_call.1} parent=1 // pred_region
      _
    $region25: #{tpu_custom_call.1} parent=1 // pred_fallthru
      _
    // Predicated region
    $region26: #{tpu_custom_call.1} parent=1 // pred_check
      _
    $region27: #{tpu_custom_call.1} parent=1 // pred_check_branch
      %61 = sbr.rel (0) target = $region29
    $region28: #{tpu_custom_call.1} parent=1 // pred_region
      %s63 = ssub.s32 16, 16
      %64 = vsyncadd [#allocation9], %s63
      %s66 = sshll.u32 [#allocation8], 4
      %s67 = int_to_ptr.vmem [resolvable:$true] %s66
      %69 = dma.hbm_to_vmem [thread:$0]  %s6, 16, %s67, [#allocation9]
    $region29: #{tpu_custom_call.1} parent=1 // pred_fallthru
      _
    // Predicated region
    $region30: #{tpu_custom_call.1} parent=1 // pred_check
      _
    $region31: #{tpu_custom_call.1} parent=1 // pred_check_branch
      %71 = sbr.rel (0) target = $region33
    $region32: #{tpu_custom_call.1} parent=1 // pred_region
      _
    $region33: #{tpu_custom_call.1} parent=1 // pred_fallthru
      _
    // Predicated region
    $region34: #{tpu_custom_call.1} parent=1 // pred_check
      _
    $region35: #{tpu_custom_call.1} parent=1 // pred_check_branch
      %73 = sbr.rel (0) target = $region37
    $region36: #{tpu_custom_call.1} parent=1 // pred_region
      %s75 = ssub.s32 16, 16
      %76 = vsyncadd [#allocation9], %s75
      %s78 = sshll.u32 [#allocation10], 4
      %s79 = int_to_ptr.vmem [resolvable:$true] %s78
      %81 = dma.hbm_to_vmem [thread:$0]  %s8, 16, %s79, [#allocation9]
    $region37: #{tpu_custom_call.1} parent=1 // pred_fallthru
      _
    // Predicated region
    $region38: #{tpu_custom_call.1} parent=1 // pred_check
      _
    $region39: #{tpu_custom_call.1} parent=1 // pred_check_branch
      %83 = sbr.rel (0) target = $region41
    $region40: #{tpu_custom_call.1} parent=1 // pred_region
      _
    $region41: #{tpu_custom_call.1} parent=1 // pred_fallthru
      _
    // Predicated region
    $region42: #{tpu_custom_call.1} parent=1 // pred_check
      _
    $region43: #{tpu_custom_call.1} parent=1 // pred_check_branch
      %85 = sbr.rel (0) target = $region45
    $region44: #{tpu_custom_call.1} parent=1 // pred_region
      %s87 = ssub.s32 512, 512
      %88 = vsyncadd [#allocation12], %s87
      %s89 = sshll.u32 [#allocation11], 4
      %s90 = int_to_ptr.vmem [resolvable:$true] %s89
      %95 = dma.hbm_to_vmem [thread:$0]  %s10, 512, %s90, [#allocation12], 128, 128, 8
    $region45: #{tpu_custom_call.1} parent=1 // pred_fallthru
      _
    // Predicated region
    $region46: #{tpu_custom_call.1} parent=1 // pred_check
      _
    $region47: #{tpu_custom_call.1} parent=1 // pred_check_branch
      %97 = sbr.rel (0) target = $region49
    $region48: #{tpu_custom_call.1} parent=1 // pred_region
      _
    $region49: #{tpu_custom_call.1} parent=1 // pred_fallthru
      _
    // Predicated region
    $region50: #{tpu_custom_call.1} parent=1 // pred_check
      _
    $region51: #{tpu_custom_call.1} parent=1 // pred_check_branch
      %99 = sbr.rel (0) target = $region53
    $region52: #{tpu_custom_call.1} parent=1 // pred_region
      %100 = dma.done [#allocation3], 128
    $region53: #{tpu_custom_call.1} parent=1 // pred_fallthru
      _
    // Predicated region
    $region54: #{tpu_custom_call.1} parent=1 // pred_check
      _
    $region55: #{tpu_custom_call.1} parent=1 // pred_check_branch
      %102 = sbr.rel (0) target = $region57
    $region56: #{tpu_custom_call.1} parent=1 // pred_region
      %103 = dma.done [#allocation6], 512
    $region57: #{tpu_custom_call.1} parent=1 // pred_fallthru
      _
    // Predicated region
    $region58: #{tpu_custom_call.1} parent=1 // pred_check
      _
    $region59: #{tpu_custom_call.1} parent=1 // pred_check_branch
      %105 = sbr.rel (0) target = $region61
    $region60: #{tpu_custom_call.1} parent=1 // pred_region
      %106 = dma.done [#allocation6], 16
    $region61: #{tpu_custom_call.1} parent=1 // pred_fallthru
      _
    // Predicated region
    $region62: #{tpu_custom_call.1} parent=1 // pred_check
      _
    $region63: #{tpu_custom_call.1} parent=1 // pred_check_branch
      %108 = sbr.rel (0) target = $region65
    $region64: #{tpu_custom_call.1} parent=1 // pred_region
      %109 = dma.done [#allocation9], 16
    $region65: #{tpu_custom_call.1} parent=1 // pred_fallthru
      _
    // Predicated region
    $region66: #{tpu_custom_call.1} parent=1 // pred_check
      _
    $region67: #{tpu_custom_call.1} parent=1 // pred_check_branch
      %111 = sbr.rel (0) target = $region69
    $region68: #{tpu_custom_call.1} parent=1 // pred_region
      %112 = dma.done [#allocation9], 16
    $region69: #{tpu_custom_call.1} parent=1 // pred_fallthru
      _
    // Predicated region
    $region70: #{tpu_custom_call.1} parent=1 // pred_check
      _
    $region71: #{tpu_custom_call.1} parent=1 // pred_check_branch
      %114 = sbr.rel (0) target = $region73
    $region72: #{tpu_custom_call.1} parent=1 // pred_region
      %115 = dma.done [#allocation12], 512
    $region73: #{tpu_custom_call.1} parent=1 // pred_fallthru
      _
    %v116 = vld [vmem:[#allocation2] sm:$0xff]
    %v117 = vld [vmem:[#allocation5] sm:$0xff]
    %v118 = vld [vmem:[#allocation5 + $0x8] sm:$0xff]
    %v119 = vld [vmem:[#allocation5 + $0x10] sm:$0xff]
    %v120 = vld [vmem:[#allocation5 + $0x18] sm:$0xff]
    %v121 = vld [vmem:[#allocation7] sm:$0x1]
    %v123 = vlaneseq
    %v124 = vshrl.u32 %v123, 7
    %v125 = vsub.s32 0, %v124
    %v126 = vrot.slane %v121, %v125
    %vm128 = vcmask 261120
    %v130 = vsel %vm128, %v116, 0
    %132 = vmatprep.subr.mxu0 0.0
    %133 = vmatpush1.msra.mxu0 %v117
    %134 = vmatprep.subr.mxu0 0.0
    %135 = vmatpush1.msra.mxu0 %v118
    %136 = vmatprep.subr.mxu0 0.0
    %137 = vmatpush1.msra.mxu0 %v119
    %138 = vmatprep.subr.mxu0 0.0
    %139 = vmatpush1.msra.mxu0 %v120
    %140 = vmatprep.subr.mxu0 0.0
    %141 = vmatpush1.msra.mxu0 0.0
    %142 = vmatprep.subr.mxu0 0.0
    %143 = vmatpush1.msra.mxu0 0.0
    %144 = vmatprep.subr.mxu0 0.0
    %145 = vmatpush1.msra.mxu0 0.0
    %146 = vmatprep.subr.mxu0 0.0
    %147 = vmatpush1.msra.mxu0 0.0
    %148 = vmatprep.subr.mxu0 0.0
    %149 = vmatpush1.msra.mxu0 0.0
    %150 = vmatprep.subr.mxu0 0.0
    %151 = vmatpush1.msra.mxu0 0.0
    %152 = vmatprep.subr.mxu0 0.0
    %153 = vmatpush1.msra.mxu0 0.0
    %154 = vmatprep.subr.mxu0 0.0
    %155 = vmatpush1.msra.mxu0 0.0
    %156 = vmatprep.subr.mxu0 0.0
    %157 = vmatpush1.msra.mxu0 0.0
    %158 = vmatprep.subr.mxu0 0.0
    %159 = vmatpush1.msra.mxu0 0.0
    %160 = vmatprep.subr.mxu0 0.0
    %161 = vmatpush1.msra.mxu0 0.0
    %162 = vmatprep.subr.mxu0 0.0
    %163 = vmatpush1.msra.mxu0 0.0
    %164 = vmatprep.subr.mxu0 0.0
    %165 = vmatpush1.msra.mxu0 0.0
    %166 = vmatprep.subr.mxu0 0.0
    %167 = vmatpush1.msra.mxu0 0.0
    %168 = vmatprep.subr.mxu0 0.0
    %169 = vmatpush1.msra.mxu0 0.0
    %170 = vmatprep.subr.mxu0 0.0
    %171 = vmatpush1.msra.mxu0 0.0
    %172 = vmatprep.subr.mxu0 0.0
    %173 = vmatpush1.msra.mxu0 0.0
    %174 = vmatprep.subr.mxu0 0.0
    %175 = vmatpush1.msra.mxu0 0.0
    %176 = vmatprep.subr.mxu0 0.0
    %177 = vmatpush1.msra.mxu0 0.0
    %178 = vmatprep.subr.mxu0 0.0
    %179 = vmatpush1.msra.mxu0 0.0
    %180 = vmatprep.subr.mxu0 0.0
    %181 = vmatpush1.msra.mxu0 0.0
    %182 = vmatprep.subr.mxu0 0.0
    %183 = vmatpush1.msra.mxu0 0.0
    %184 = vmatprep.subr.mxu0 0.0
    %185 = vmatpush1.msra.mxu0 0.0
    %186 = vmatprep.subr.mxu0 0.0
    %187 = vmatpush1.msra.mxu0 0.0
    %188 = vmatprep.subr.mxu0 0.0
    %189 = vmatpush1.msra.mxu0 0.0
    %190 = vmatprep.subr.mxu0 0.0
    %191 = vmatpush1.msra.mxu0 0.0
    %192 = vmatprep.subr.mxu0 0.0
    %193 = vmatpush1.msra.mxu0 0.0
    %194 = vmatprep.subr.mxu0 0.0
    %195 = vmatpush1.msra.mxu0 0.0
    %196 = vmatprep.mubr.f32.mxu0 0.0
    %197 = vmatmul.mubr.f32.gmra.mrb[0].mxu0 %v130
    %v198 = vpop.f32.mrb[0].mxu0
    %v199 = vadd.f32 %v126, %v198
    %v200 = vpop.f32.mrb[0].mxu0
    %201 = vdwg.mxu0
    %v202 = vmax.f32 %v199, 0.0
    %v203 = vld [vmem:[%s3] sm:$0xff]
    %v204 = vld [vmem:[%s3 + $0x8] sm:$0xff]
    %v205 = vld [vmem:[%s3 + $0x10] sm:$0xff]
    %v206 = vld [vmem:[%s3 + $0x18] sm:$0xff]
    %v207 = vld [vmem:[%s3 + $0x20] sm:$0xff]
    %v208 = vld [vmem:[%s3 + $0x28] sm:$0xff]
    %v209 = vld [vmem:[%s3 + $0x30] sm:$0xff]
    %v210 = vld [vmem:[%s3 + $0x38] sm:$0xff]
    %v211 = vld [vmem:[%s3 + $0x40] sm:$0xff]
    %v212 = vld [vmem:[%s3 + $0x48] sm:$0xff]
    %v213 = vld [vmem:[%s3 + $0x50] sm:$0xff]
    %v214 = vld [vmem:[%s3 + $0x58] sm:$0xff]
    %v215 = vld [vmem:[%s3 + $0x60] sm:$0xff]
    %v216 = vld [vmem:[%s3 + $0x68] sm:$0xff]
    %v217 = vld [vmem:[%s3 + $0x70] sm:$0xff]
    %v218 = vld [vmem:[%s3 + $0x78] sm:$0xff]
    %v219 = vld [vmem:[%s3 + $0x80] sm:$0xff]
    %v220 = vld [vmem:[%s3 + $0x88] sm:$0xff]
    %v221 = vld [vmem:[%s3 + $0x90] sm:$0xff]
    %v222 = vld [vmem:[%s3 + $0x98] sm:$0xff]
    %v223 = vld [vmem:[%s3 + $0xa0] sm:$0xff]
    %v224 = vld [vmem:[%s3 + $0xa8] sm:$0xff]
    %v225 = vld [vmem:[%s3 + $0xb0] sm:$0xff]
    %v226 = vld [vmem:[%s3 + $0xb8] sm:$0xff]
    %v227 = vld [vmem:[%s3 + $0xc0] sm:$0xff]
    %v228 = vld [vmem:[%s3 + $0xc8] sm:$0xff]
    %v229 = vld [vmem:[%s3 + $0xd0] sm:$0xff]
    %v230 = vld [vmem:[%s3 + $0xd8] sm:$0xff]
    %v231 = vld [vmem:[%s3 + $0xe0] sm:$0xff]
    %v232 = vld [vmem:[%s3 + $0xe8] sm:$0xff]
    %v233 = vld [vmem:[%s3 + $0xf0] sm:$0xff]
    %v234 = vld [vmem:[%s3 + $0xf8] sm:$0xff]
    %v235 = vld [vmem:[%s4] sm:$0x3]
    %v237 = vlaneseq
    %v238 = vshrl.u32 %v237, 7
    %v239 = vsub.s32 0, %v238
    %v240 = vrot.slane %v235, %v239
    %v241 = vlaneseq
    %v242 = vshrl.u32 %v241, 7
    %v243 = vsub.s32 1, %v242
    %v244 = vrot.slane %v235, %v243
    %247 = vmatprep.subr.mxu0 %v204
    %248 = vmatpush1.msra.mxu0 %v203
    %249 = vmatprep.subr.mxu0 %v206
    %250 = vmatpush1.msra.mxu0 %v205
    %251 = vmatprep.subr.mxu0 %v208
    %252 = vmatpush1.msra.mxu0 %v207
    %253 = vmatprep.subr.mxu0 %v210
    %254 = vmatpush1.msra.mxu0 %v209
    %255 = vmatprep.subr.mxu0 %v212
    %256 = vmatpush1.msra.mxu0 %v211
    %257 = vmatprep.subr.mxu0 %v214
    %258 = vmatpush1.msra.mxu0 %v213
    %259 = vmatprep.subr.mxu0 %v216
    %260 = vmatpush1.msra.mxu0 %v215
    %261 = vmatprep.subr.mxu0 %v218
    %262 = vmatpush1.msra.mxu0 %v217
    %263 = vmatprep.subr.mxu0 %v220
    %264 = vmatpush1.msra.mxu0 %v219
    %265 = vmatprep.subr.mxu0 %v222
    %266 = vmatpush1.msra.mxu0 %v221
    %267 = vmatprep.subr.mxu0 %v224
    %268 = vmatpush1.msra.mxu0 %v223
    %269 = vmatprep.subr.mxu0 %v226
    %270 = vmatpush1.msra.mxu0 %v225
    %271 = vmatprep.subr.mxu0 %v228
    %272 = vmatpush1.msra.mxu0 %v227
    %273 = vmatprep.subr.mxu0 %v230
    %274 = vmatpush1.msra.mxu0 %v229
    %275 = vmatprep.subr.mxu0 %v232
    %276 = vmatpush1.msra.mxu0 %v231
    %277 = vmatprep.subr.mxu0 %v234
    %278 = vmatpush1.msra.mxu0 %v233
    %279 = vmatprep.subr.mxu0 0.0
    %280 = vmatpush1.msra.mxu0 0.0
    %281 = vmatprep.subr.mxu0 0.0
    %282 = vmatpush1.msra.mxu0 0.0
    %283 = vmatprep.subr.mxu0 0.0
    %284 = vmatpush1.msra.mxu0 0.0
    %285 = vmatprep.subr.mxu0 0.0
    %286 = vmatpush1.msra.mxu0 0.0
    %287 = vmatprep.subr.mxu0 0.0
    %288 = vmatpush1.msra.mxu0 0.0
    %289 = vmatprep.subr.mxu0 0.0
    %290 = vmatpush1.msra.mxu0 0.0
    %291 = vmatprep.subr.mxu0 0.0
    %292 = vmatpush1.msra.mxu0 0.0
    %293 = vmatprep.subr.mxu0 0.0
    %294 = vmatpush1.msra.mxu0 0.0
    %295 = vmatprep.subr.mxu0 0.0
    %296 = vmatpush1.msra.mxu0 0.0
    %297 = vmatprep.subr.mxu0 0.0
    %298 = vmatpush1.msra.mxu0 0.0
    %299 = vmatprep.subr.mxu0 0.0
    %300 = vmatpush1.msra.mxu0 0.0
    %301 = vmatprep.subr.mxu0 0.0
    %302 = vmatpush1.msra.mxu0 0.0
    %303 = vmatprep.subr.mxu0 0.0
    %304 = vmatpush1.msra.mxu0 0.0
    %305 = vmatprep.subr.mxu0 0.0
    %306 = vmatpush1.msra.mxu0 0.0
    %307 = vmatprep.subr.mxu0 0.0
    %308 = vmatpush1.msra.mxu0 0.0
    %309 = vmatprep.subr.mxu0 0.0
    %310 = vmatpush1.msra.mxu0 0.0
    %311 = vmatprep.mubr.f32.mxu0 0.0
    %312 = vmatmul.mubr.f32.gmra.mrb[0].mxu0 %v202
    %v313 = vpop.f32.mrb[0].mxu0
    %v314 = vadd.f32 %v240, %v313
    %v315 = vpop.f32.mrb[0].mxu0
    %v316 = vadd.f32 %v244, %v315
    %317 = vdwg.mxu0
    %v318 = vmax.f32 %v314, 0.0
    %v319 = vmax.f32 %v316, 0.0
    %v320 = vmax.f32 %v318, %v319
    %v321 = vld [vmem:[%s5] sm:$0xff]
    %v322 = vld [vmem:[%s5 + $0x8] sm:$0xff]
    %v323 = vld [vmem:[%s5 + $0x10] sm:$0xff]
    %v324 = vld [vmem:[%s5 + $0x18] sm:$0xff]
    %v325 = vld [vmem:[%s5 + $0x20] sm:$0xff]
    %v326 = vld [vmem:[%s5 + $0x28] sm:$0xff]
    %v327 = vld [vmem:[%s5 + $0x30] sm:$0xff]
    %v328 = vld [vmem:[%s5 + $0x38] sm:$0xff]
    %v329 = vld [vmem:[%s5 + $0x40] sm:$0xff]
    %v330 = vld [vmem:[%s5 + $0x48] sm:$0xff]
    %v331 = vld [vmem:[%s5 + $0x50] sm:$0xff]
    %v332 = vld [vmem:[%s5 + $0x58] sm:$0xff]
    %v333 = vld [vmem:[%s5 + $0x60] sm:$0xff]
    %v334 = vld [vmem:[%s5 + $0x68] sm:$0xff]
    %v335 = vld [vmem:[%s5 + $0x70] sm:$0xff]
    %v336 = vld [vmem:[%s5 + $0x78] sm:$0xff]
    %v337 = vld [vmem:[#allocation8] sm:$0x1]
    %v339 = vlaneseq
    %v340 = vshrl.u32 %v339, 7
    %v341 = vsub.s32 0, %v340
    %v342 = vrot.slane %v337, %v341
    %344 = vmatprep.subr.mxu0 0.0
    %345 = vmatpush1.msra.mxu0 %v321
    %346 = vmatprep.subr.mxu0 0.0
    %347 = vmatpush1.msra.mxu0 %v322
    %348 = vmatprep.subr.mxu0 0.0
    %349 = vmatpush1.msra.mxu0 %v323
    %350 = vmatprep.subr.mxu0 0.0
    %351 = vmatpush1.msra.mxu0 %v324
    %352 = vmatprep.subr.mxu0 0.0
    %353 = vmatpush1.msra.mxu0 %v325
    %354 = vmatprep.subr.mxu0 0.0
    %355 = vmatpush1.msra.mxu0 %v326
    %356 = vmatprep.subr.mxu0 0.0
    %357 = vmatpush1.msra.mxu0 %v327
    %358 = vmatprep.subr.mxu0 0.0
    %359 = vmatpush1.msra.mxu0 %v328
    %360 = vmatprep.subr.mxu0 0.0
    %361 = vmatpush1.msra.mxu0 %v329
    %362 = vmatprep.subr.mxu0 0.0
    %363 = vmatpush1.msra.mxu0 %v330
    %364 = vmatprep.subr.mxu0 0.0
    %365 = vmatpush1.msra.mxu0 %v331
    %366 = vmatprep.subr.mxu0 0.0
    %367 = vmatpush1.msra.mxu0 %v332
    %368 = vmatprep.subr.mxu0 0.0
    %369 = vmatpush1.msra.mxu0 %v333
    %370 = vmatprep.subr.mxu0 0.0
    %371 = vmatpush1.msra.mxu0 %v334
    %372 = vmatprep.subr.mxu0 0.0
    %373 = vmatpush1.msra.mxu0 %v335
    %374 = vmatprep.subr.mxu0 0.0
    %375 = vmatpush1.msra.mxu0 %v336
    %376 = vmatprep.subr.mxu0 0.0
    %377 = vmatpush1.msra.mxu0 0.0
    %378 = vmatprep.subr.mxu0 0.0
    %379 = vmatpush1.msra.mxu0 0.0
    %380 = vmatprep.subr.mxu0 0.0
    %381 = vmatpush1.msra.mxu0 0.0
    %382 = vmatprep.subr.mxu0 0.0
    %383 = vmatpush1.msra.mxu0 0.0
    %384 = vmatprep.subr.mxu0 0.0
    %385 = vmatpush1.msra.mxu0 0.0
    %386 = vmatprep.subr.mxu0 0.0
    %387 = vmatpush1.msra.mxu0 0.0
    %388 = vmatprep.subr.mxu0 0.0
    %389 = vmatpush1.msra.mxu0 0.0
    %390 = vmatprep.subr.mxu0 0.0
    %391 = vmatpush1.msra.mxu0 0.0
    %392 = vmatprep.subr.mxu0 0.0
    %393 = vmatpush1.msra.mxu0 0.0
    %394 = vmatprep.subr.mxu0 0.0
    %395 = vmatpush1.msra.mxu0 0.0
    %396 = vmatprep.subr.mxu0 0.0
    %397 = vmatpush1.msra.mxu0 0.0
    %398 = vmatprep.subr.mxu0 0.0
    %399 = vmatpush1.msra.mxu0 0.0
    %400 = vmatprep.subr.mxu0 0.0
    %401 = vmatpush1.msra.mxu0 0.0
    %402 = vmatprep.subr.mxu0 0.0
    %403 = vmatpush1.msra.mxu0 0.0
    %404 = vmatprep.subr.mxu0 0.0
    %405 = vmatpush1.msra.mxu0 0.0
    %406 = vmatprep.subr.mxu0 0.0
    %407 = vmatpush1.msra.mxu0 0.0
    %408 = vmatprep.mubr.f32.mxu0 0.0
    %409 = vmatmul.mubr.f32.gmra.mrb[0].mxu0 %v320
    %v410 = vpop.f32.mrb[0].mxu0
    %v411 = vadd.f32 %v342, %v410
    %v412 = vpop.f32.mrb[0].mxu0
    %413 = vdwg.mxu0
    %v414 = vmax.f32 %v411, 0.0
    %v415 = vld [vmem:[%s7] sm:$0xff]
    %v416 = vld [vmem:[%s7 + $0x8] sm:$0xff]
    %v417 = vld [vmem:[%s7 + $0x10] sm:$0xff]
    %v418 = vld [vmem:[%s7 + $0x18] sm:$0xff]
    %v419 = vld [vmem:[%s7 + $0x20] sm:$0xff]
    %v420 = vld [vmem:[%s7 + $0x28] sm:$0xff]
    %v421 = vld [vmem:[%s7 + $0x30] sm:$0xff]
    %v422 = vld [vmem:[%s7 + $0x38] sm:$0xff]
    %v423 = vld [vmem:[#allocation10] sm:$0x1]
    %v425 = vlaneseq
    %v426 = vshrl.u32 %v425, 7
    %v427 = vsub.s32 0, %v426
    %v428 = vrot.slane %v423, %v427
    %vm430 = vcmask 523264
    %v432 = vsel %vm430, %v414, 0
    %434 = vmatprep.subr.mxu0 0.0
    %435 = vmatpush1.msra.mxu0 %v415
    %436 = vmatprep.subr.mxu0 0.0
    %437 = vmatpush1.msra.mxu0 %v416
    %438 = vmatprep.subr.mxu0 0.0
    %439 = vmatpush1.msra.mxu0 %v417
    %440 = vmatprep.subr.mxu0 0.0
    %441 = vmatpush1.msra.mxu0 %v418
    %442 = vmatprep.subr.mxu0 0.0
    %443 = vmatpush1.msra.mxu0 %v419
    %444 = vmatprep.subr.mxu0 0.0
    %445 = vmatpush1.msra.mxu0 %v420
    %446 = vmatprep.subr.mxu0 0.0
    %447 = vmatpush1.msra.mxu0 %v421
    %448 = vmatprep.subr.mxu0 0.0
    %449 = vmatpush1.msra.mxu0 %v422
    %450 = vmatprep.subr.mxu0 0.0
    %451 = vmatpush1.msra.mxu0 0.0
    %452 = vmatprep.subr.mxu0 0.0
    %453 = vmatpush1.msra.mxu0 0.0
    %454 = vmatprep.subr.mxu0 0.0
    %455 = vmatpush1.msra.mxu0 0.0
    %456 = vmatprep.subr.mxu0 0.0
    %457 = vmatpush1.msra.mxu0 0.0
    %458 = vmatprep.subr.mxu0 0.0
    %459 = vmatpush1.msra.mxu0 0.0
    %460 = vmatprep.subr.mxu0 0.0
    %461 = vmatpush1.msra.mxu0 0.0
    %462 = vmatprep.subr.mxu0 0.0
    %463 = vmatpush1.msra.mxu0 0.0
    %464 = vmatprep.subr.mxu0 0.0
    %465 = vmatpush1.msra.mxu0 0.0
    %466 = vmatprep.subr.mxu0 0.0
    %467 = vmatpush1.msra.mxu0 0.0
    %468 = vmatprep.subr.mxu0 0.0
    %469 = vmatpush1.msra.mxu0 0.0
    %470 = vmatprep.subr.mxu0 0.0
    %471 = vmatpush1.msra.mxu0 0.0
    %472 = vmatprep.subr.mxu0 0.0
    %473 = vmatpush1.msra.mxu0 0.0
    %474 = vmatprep.subr.mxu0 0.0
    %475 = vmatpush1.msra.mxu0 0.0
    %476 = vmatprep.subr.mxu0 0.0
    %477 = vmatpush1.msra.mxu0 0.0
    %478 = vmatprep.subr.mxu0 0.0
    %479 = vmatpush1.msra.mxu0 0.0
    %480 = vmatprep.subr.mxu0 0.0
    %481 = vmatpush1.msra.mxu0 0.0
    %482 = vmatprep.subr.mxu0 0.0
    %483 = vmatpush1.msra.mxu0 0.0
    %484 = vmatprep.subr.mxu0 0.0
    %485 = vmatpush1.msra.mxu0 0.0
    %486 = vmatprep.subr.mxu0 0.0
    %487 = vmatpush1.msra.mxu0 0.0
    %488 = vmatprep.subr.mxu0 0.0
    %489 = vmatpush1.msra.mxu0 0.0
    %490 = vmatprep.subr.mxu0 0.0
    %491 = vmatpush1.msra.mxu0 0.0
    %492 = vmatprep.subr.mxu0 0.0
    %493 = vmatpush1.msra.mxu0 0.0
    %494 = vmatprep.subr.mxu0 0.0
    %495 = vmatpush1.msra.mxu0 0.0
    %496 = vmatprep.subr.mxu0 0.0
    %497 = vmatpush1.msra.mxu0 0.0
    %498 = vmatprep.mubr.f32.mxu0 0.0
    %499 = vmatmul.mubr.f32.gmra.mrb[0].mxu0 %v432
    %v500 = vpop.f32.mrb[0].mxu0
    %v501 = vadd.f32 %v428, %v500
    %v502 = vpop.f32.mrb[0].mxu0
    %503 = vdwg.mxu0
    %v504 = vmax.f32 %v501, 0.0
    %v505 = vld [vmem:[%s9] sm:$0xff]
    %v506 = vld [vmem:[%s9 + $0x8] sm:$0xff]
    %v507 = vld [vmem:[%s9 + $0x10] sm:$0xff]
    %v508 = vld [vmem:[%s9 + $0x18] sm:$0xff]
    %v509 = vld [vmem:[%s9 + $0x20] sm:$0xff]
    %v510 = vld [vmem:[%s9 + $0x28] sm:$0xff]
    %v511 = vld [vmem:[%s9 + $0x30] sm:$0xff]
    %v512 = vld [vmem:[%s9 + $0x38] sm:$0xff]
    %v513 = vld [vmem:[#allocation11] sm:$0xff]
    %v514 = vld [vmem:[#allocation11 + $0x8] sm:$0xff]
    %v515 = vld [vmem:[#allocation11 + $0x10] sm:$0xff]
    %v516 = vld [vmem:[#allocation11 + $0x18] sm:$0xff]
    %v518 = vsel %vm128, %v504, 0
    %520 = vmatprep.subr.mxu0 0.0
    %521 = vmatpush1.msra.mxu0 %v513
    %522 = vmatprep.subr.mxu0 0.0
    %523 = vmatpush1.msra.mxu0 %v514
    %524 = vmatprep.subr.mxu0 0.0
    %525 = vmatpush1.msra.mxu0 %v515
    %526 = vmatprep.subr.mxu0 0.0
    %527 = vmatpush1.msra.mxu0 %v516
    %528 = vmatprep.subr.mxu0 0.0
    %529 = vmatpush1.msra.mxu0 0.0
    %530 = vmatprep.subr.mxu0 0.0
    %531 = vmatpush1.msra.mxu0 0.0
    %532 = vmatprep.subr.mxu0 0.0
    %533 = vmatpush1.msra.mxu0 0.0
    %534 = vmatprep.subr.mxu0 0.0
    %535 = vmatpush1.msra.mxu0 0.0
    %536 = vmatprep.subr.mxu0 0.0
    %537 = vmatpush1.msra.mxu0 0.0
    %538 = vmatprep.subr.mxu0 0.0
    %539 = vmatpush1.msra.mxu0 0.0
    %540 = vmatprep.subr.mxu0 0.0
    %541 = vmatpush1.msra.mxu0 0.0
    %542 = vmatprep.subr.mxu0 0.0
    %543 = vmatpush1.msra.mxu0 0.0
    %544 = vmatprep.subr.mxu0 0.0
    %545 = vmatpush1.msra.mxu0 0.0
    %546 = vmatprep.subr.mxu0 0.0
    %547 = vmatpush1.msra.mxu0 0.0
    %548 = vmatprep.subr.mxu0 0.0
    %549 = vmatpush1.msra.mxu0 0.0
    %550 = vmatprep.subr.mxu0 0.0
    %551 = vmatpush1.msra.mxu0 0.0
    %552 = vmatprep.subr.mxu0 0.0
    %553 = vmatpush1.msra.mxu0 0.0
    %554 = vmatprep.subr.mxu0 0.0
    %555 = vmatpush1.msra.mxu0 0.0
    %556 = vmatprep.subr.mxu0 0.0
    %557 = vmatpush1.msra.mxu0 0.0
    %558 = vmatprep.subr.mxu0 0.0
    %559 = vmatpush1.msra.mxu0 0.0
    %560 = vmatprep.subr.mxu0 0.0
    %561 = vmatpush1.msra.mxu0 0.0
    %562 = vmatprep.subr.mxu0 0.0
    %563 = vmatpush1.msra.mxu0 0.0
    %564 = vmatprep.subr.mxu0 0.0
    %565 = vmatpush1.msra.mxu0 0.0
    %566 = vmatprep.subr.mxu0 0.0
    %567 = vmatpush1.msra.mxu0 0.0
    %568 = vmatprep.subr.mxu0 0.0
    %569 = vmatpush1.msra.mxu0 0.0
    %570 = vmatprep.subr.mxu0 0.0
    %571 = vmatpush1.msra.mxu0 0.0
    %572 = vmatprep.subr.mxu0 0.0
    %573 = vmatpush1.msra.mxu0 0.0
    %574 = vmatprep.subr.mxu0 0.0
    %575 = vmatpush1.msra.mxu0 0.0
    %576 = vmatprep.subr.mxu0 0.0
    %577 = vmatpush1.msra.mxu0 0.0
    %578 = vmatprep.subr.mxu0 0.0
    %579 = vmatpush1.msra.mxu0 0.0
    %580 = vmatprep.subr.mxu0 0.0
    %581 = vmatpush1.msra.mxu0 0.0
    %582 = vmatprep.subr.mxu0 0.0
    %583 = vmatpush1.msra.mxu0 0.0
    %584 = vmatprep.mubr.f32.mxu0 0.0
    %585 = vmatmul.mubr.f32.gmra.mrb[0].mxu0 %v518
    %v586 = vpop.f32.mrb[0].mxu0
    %v587 = vadd.f32 0.0, %v586
    %v588 = vpop.f32.mrb[0].mxu0
    %589 = vdwg.mxu0
    %590 = vmatprep.subr.mxu0 0.0
    %591 = vmatpush1.msra.mxu0 %v505
    %592 = vmatprep.subr.mxu0 0.0
    %593 = vmatpush1.msra.mxu0 %v506
    %594 = vmatprep.subr.mxu0 0.0
    %595 = vmatpush1.msra.mxu0 %v507
    %596 = vmatprep.subr.mxu0 0.0
    %597 = vmatpush1.msra.mxu0 %v508
    %598 = vmatprep.subr.mxu0 0.0
    %599 = vmatpush1.msra.mxu0 %v509
    %600 = vmatprep.subr.mxu0 0.0
    %601 = vmatpush1.msra.mxu0 %v510
    %602 = vmatprep.subr.mxu0 0.0
    %603 = vmatpush1.msra.mxu0 %v511
    %604 = vmatprep.subr.mxu0 0.0
    %605 = vmatpush1.msra.mxu0 %v512
    %606 = vmatprep.subr.mxu0 0.0
    %607 = vmatpush1.msra.mxu0 0.0
    %608 = vmatprep.subr.mxu0 0.0
    %609 = vmatpush1.msra.mxu0 0.0
    %610 = vmatprep.subr.mxu0 0.0
    %611 = vmatpush1.msra.mxu0 0.0
    %612 = vmatprep.subr.mxu0 0.0
    %613 = vmatpush1.msra.mxu0 0.0
    %614 = vmatprep.subr.mxu0 0.0
    %615 = vmatpush1.msra.mxu0 0.0
    %616 = vmatprep.subr.mxu0 0.0
    %617 = vmatpush1.msra.mxu0 0.0
    %618 = vmatprep.subr.mxu0 0.0
    %619 = vmatpush1.msra.mxu0 0.0
    %620 = vmatprep.subr.mxu0 0.0
    %621 = vmatpush1.msra.mxu0 0.0
    %622 = vmatprep.subr.mxu0 0.0
    %623 = vmatpush1.msra.mxu0 0.0
    %624 = vmatprep.subr.mxu0 0.0
    %625 = vmatpush1.msra.mxu0 0.0
    %626 = vmatprep.subr.mxu0 0.0
    %627 = vmatpush1.msra.mxu0 0.0
    %628 = vmatprep.subr.mxu0 0.0
    %629 = vmatpush1.msra.mxu0 0.0
    %630 = vmatprep.subr.mxu0 0.0
    %631 = vmatpush1.msra.mxu0 0.0
    %632 = vmatprep.subr.mxu0 0.0
    %633 = vmatpush1.msra.mxu0 0.0
    %634 = vmatprep.subr.mxu0 0.0
    %635 = vmatpush1.msra.mxu0 0.0
    %636 = vmatprep.subr.mxu0 0.0
    %637 = vmatpush1.msra.mxu0 0.0
    %638 = vmatprep.subr.mxu0 0.0
    %639 = vmatpush1.msra.mxu0 0.0
    %640 = vmatprep.subr.mxu0 0.0
    %641 = vmatpush1.msra.mxu0 0.0
    %642 = vmatprep.subr.mxu0 0.0
    %643 = vmatpush1.msra.mxu0 0.0
    %644 = vmatprep.subr.mxu0 0.0
    %645 = vmatpush1.msra.mxu0 0.0
    %646 = vmatprep.subr.mxu0 0.0
    %647 = vmatpush1.msra.mxu0 0.0
    %648 = vmatprep.subr.mxu0 0.0
    %649 = vmatpush1.msra.mxu0 0.0
    %650 = vmatprep.subr.mxu0 0.0
    %651 = vmatpush1.msra.mxu0 0.0
    %652 = vmatprep.subr.mxu0 0.0
    %653 = vmatpush1.msra.mxu0 0.0
    %654 = vmatprep.mubr.f32.mxu0 0.0
    %655 = vmatmul.mubr.f32.gmra.mrb[0].mxu0 %v432
    %v656 = vpop.f32.mrb[0].mxu0
    %v657 = vadd.f32 %v587, %v656
    %v658 = vpop.f32.mrb[0].mxu0
    %659 = vdwg.mxu0
    %v660 = vld [vmem:[%s11] sm:$0x1]
    %v662 = vlaneseq
    %v663 = vshrl.u32 %v662, 7
    %v664 = vsub.s32 0, %v663
    %v665 = vrot.slane %v660, %v664
    %v667 = vadd.f32 %v657, %v665
    %668 = vst [vmem:[#allocation13] sm:$0xff] %v667
    // Predicated region
    $region74: #{tpu_custom_call.1} parent=1 // pred_check
      _
    $region75: #{tpu_custom_call.1} parent=1 // pred_check_branch
      %670 = sbr.rel (0) target = $region77
    $region76: #{tpu_custom_call.1} parent=1 // pred_region
      %s672 = ssub.s32 128, 128
      %673 = vsyncadd [#allocation4], %s672
      %s675 = sshll.u32 [#allocation13], 4
      %s676 = int_to_ptr.vmem [resolvable:$true] %s675
      %678 = dma.vmem_to_hbm [thread:$0]  %s676, 128, %s12, [#allocation4]
    $region77: #{tpu_custom_call.1} parent=1 // pred_fallthru
      _
    // Predicated region
    $region78: #{tpu_custom_call.1} parent=1 // pred_check
      _
    $region79: #{tpu_custom_call.1} parent=1 // pred_check_branch
      %680 = sbr.rel (0) target = $region81
    $region80: #{tpu_custom_call.1} parent=1 // pred_region
      %681 = dma.done [#allocation4], 128
    $region81: #{tpu_custom_call.1} parent=1 // pred_fallthru
      _
    %682 = vsyncpa [#allocation3], 1
    %683 = vsyncpa [#allocation6], 1
    %684 = vsyncpa [#allocation9], 1
    %685 = vsyncpa [#allocation12], 1
    %686 = vsyncpa [#allocation4], 1

</llo_original>
